<compile_context>
chip_gen: v5e
topology: v5e:2x2
jax: 0.10.0
libtpu: 0.0.40
codegen_flags: <defaults>
</compile_context>

<pallas_src>
import functools

import jax
import jax.numpy as jnp
from jax.experimental import pallas as pl
from jax.experimental.pallas import tpu as pltpu

IN_FEATURES = 64
OUT_FEATURES = 32
LANE_PACK = 128 // OUT_FEATURES          # 4 batch rows packed per 128-lane output row
PACKED_IN = LANE_PACK * IN_FEATURES      # 256
PACKED_OUT = LANE_PACK * OUT_FEATURES    # 128


def _round_up(x, m):
    return (x + m - 1) // m * m


def _detect_v5e():
    # bf16 MXU operands only matter on v5e (4x overfill + multi-pass f32 matmul sits
    # near the compute roofline there); v6e/v7x hide it comfortably.
    try:
        kind = jax.devices()[0].device_kind.lower()
    except Exception:
        return False
    return ("v5e" in kind) or ("v5 lite" in kind) or ("v5litepod" in kind)


def _linear_silu_kernel(x_ref, w_ref, b_ref, o_ref, *, mxu_bf16):
    # x_ref: (tq, 256)  w_ref: (256, 128) block-diag  b_ref: (1, 128)  o_ref: (tq, 128)
    dot_dtype = jnp.bfloat16 if mxu_bf16 else jnp.float32
    x = x_ref[...].astype(dot_dtype)
    w = w_ref[...].astype(dot_dtype)
    b = b_ref[...].astype(jnp.float32)
    v1 = jnp.dot(x, w, preferred_element_type=jnp.float32) + b   # linear (MXU, f32 acc)
    v2 = jax.nn.sigmoid(v1)                                      # sigmoid (EUP, f32)
    o_ref[...] = (v1 * v2).astype(o_ref.dtype)                   # v1 * sigmoid(v1)


def pack_params(w_t, b):
    """Precompute the lane-dense packed parameters once (hoisted out of per-call path).

    w_t: (64, 32) = W.T, b: (32,)  ->  (w_bd (256,128), b_packed (1,128))
    """
    w_bd = jnp.kron(jnp.eye(LANE_PACK, dtype=w_t.dtype), w_t)        # block-diagonal
    b_packed = jnp.tile(b, LANE_PACK).reshape(1, PACKED_OUT)
    return w_bd, b_packed


def linear_silu_packed(x, w_bd, b_packed, *, max_packed_tile=2048, min_grid_steps=4,
                       mxu_bf16=None, x_buffer_count=2):
    """x: (B, 64) -> (B, 32).  Output dtype follows x.dtype (bf16 in -> bf16 out)."""
    B = x.shape[0]
    if mxu_bf16 is None:
        mxu_bf16 = _detect_v5e()
    out_dtype = x.dtype

    # Tiny pad (<= LANE_PACK-1 rows) so the row-major packing reshape is valid.
    pad_rows = (-B) % LANE_PACK
    if pad_rows:
        x = jnp.pad(x, ((0, pad_rows), (0, 0)))
    packed_rows = (B + pad_rows) // LANE_PACK

    # Packed-row tile: big enough to amortize per-step overhead, but capped so the
    # "parallel" grid axis has >= min_grid_steps steps (v7x second TC) when possible.
    tq = min(max_packed_tile,
             max(8, _round_up(pl.cdiv(packed_rows, min_grid_steps), 8)))
    grid_steps = pl.cdiv(packed_rows, tq)

    # Free row-major reshape (no data movement): 4 batch rows per packed row.
    x_packed = x.reshape(packed_rows, PACKED_IN)

    # Explicit VMEM budget: double-buffered in/out tiles + resident weights + f32 temps.
    itemsize_in = jnp.dtype(x.dtype).itemsize
    itemsize_out = jnp.dtype(out_dtype).itemsize
    vmem_budget = (2 * tq * PACKED_IN * itemsize_in          # x tiles (double-buffered)
                   + 2 * tq * PACKED_OUT * itemsize_out      # out tiles (double-buffered)
                   + PACKED_IN * PACKED_OUT * jnp.dtype(w_bd.dtype).itemsize
                   + PACKED_OUT * jnp.dtype(b_packed.dtype).itemsize
                   + 4 * tq * PACKED_OUT * 4                 # f32 v1/v2/product temporaries
                   + (2 << 20))                              # headroom
    vmem_limit = int(min(max(vmem_budget, 16 << 20), 48 << 20))  # safe on v7x (64 MiB phys)

    x_spec_kwargs = {}
    if x_buffer_count != 2:
        x_spec_kwargs["pipeline_mode"] = pl.Buffered(x_buffer_count)

    out_packed = pl.pallas_call(
        functools.partial(_linear_silu_kernel, mxu_bf16=mxu_bf16),
        out_shape=jax.ShapeDtypeStruct((packed_rows, PACKED_OUT), out_dtype),
        grid=(grid_steps,),
        in_specs=[
            pl.BlockSpec((tq, PACKED_IN), lambda i: (i, 0), **x_spec_kwargs),  # streamed x
            pl.BlockSpec((PACKED_IN, PACKED_OUT), lambda i: (0, 0)),  # VMEM-resident weight
            pl.BlockSpec((1, PACKED_OUT), lambda i: (0, 0)),          # VMEM-resident bias
        ],
        out_specs=pl.BlockSpec((tq, PACKED_OUT), lambda i: (i, 0)),   # lane-dense stores
        compiler_params=pltpu.CompilerParams(
            dimension_semantics=("parallel",),      # shard batch tiles across TCs on v7x
            vmem_limit_bytes=vmem_limit,
        ),
    )(x_packed, w_bd, b_packed)

    # Free row-major unpack, then drop the (tiny) padding rows.
    return out_packed.reshape(packed_rows * LANE_PACK, OUT_FEATURES)[:B]


def linear_silu(x, w_t, b, **kwargs):
    """Convenience wrapper: packs params per call.  Prefer pack_params + linear_silu_packed
    (or a jitted closure over packed params) for repeated invocations."""
    w_bd, b_packed = pack_params(w_t, b)
    return linear_silu_packed(x, w_bd, b_packed, **kwargs)


if __name__ == "__main__":
    key = jax.random.PRNGKey(0)
    k_x, k_w, k_b, k_x2, k_x3 = jax.random.split(key, 5)

    # PyTorch Linear default init: U(-1/sqrt(in), 1/sqrt(in))
    bound = 1.0 / (IN_FEATURES ** 0.5)
    w = jax.random.uniform(k_w, (OUT_FEATURES, IN_FEATURES), jnp.float32, -bound, bound)
    b = jax.random.uniform(k_b, (OUT_FEATURES,), jnp.float32, -bound, bound)
    w_t = w.T  # (64, 32)

    # Pack parameters once (hoisted out of the per-call path).
    w_bd, b_packed = pack_params(w_t, b)
    fwd = jax.jit(lambda x: linear_silu_packed(x, w_bd, b_packed))
    fwd_small_tiles = jax.jit(
        lambda x: linear_silu_packed(x, w_bd, b_packed, max_packed_tile=16))

    def ref_fn(x):
        v1 = x.astype(jnp.float32) @ w_t + b
        return v1 * jax.nn.sigmoid(v1)

    # f32 tolerance is tight unless the auto-detected v5e bf16-MXU path is active.
    tol = 2e-2 if _detect_v5e() else 1e-5

    # 1) The module's own input shape: x1 = torch.randn(1, 64)
    x1 = jax.random.normal(k_x, (1, IN_FEATURES), jnp.float32)
    out1 = jax.block_until_ready(fwd(x1))
    assert out1.shape == (1, OUT_FEATURES)
    assert jnp.allclose(out1, ref_fn(x1), atol=tol, rtol=tol)

    # 2) Non-divisible batch with small tiles: multi-step grid + masked partial edge block.
    x2 = jax.random.normal(k_x2, (301, IN_FEATURES), jnp.float32)
    out2 = jax.block_until_ready(fwd_small_tiles(x2))
    assert out2.shape == (301, OUT_FEATURES)
    assert jnp.allclose(out2, ref_fn(x2), atol=tol, rtol=tol)

    # 3) bf16 input / bf16 output path (narrow HBM streams; compute stays f32 in-kernel).
    x3 = jax.random.normal(k_x3, (512, IN_FEATURES), jnp.float32).astype(jnp.bfloat16)
    out3 = jax.block_until_ready(fwd(x3))
    assert out3.shape == (512, OUT_FEATURES) and out3.dtype == jnp.bfloat16
    assert jnp.allclose(out3.astype(jnp.float32), ref_fn(x3), atol=2e-2, rtol=2e-2)

    print("KERNEL_OK")
</pallas_src>

<mosaic_0001>
module attributes {stable_mosaic.version = 11 : i64} {
  func.func @_linear_silu_kernel(%arg0: i32, %arg1: memref<8x256xf32, #tpu.memory_space<vmem>>, %arg2: memref<256x128xf32, #tpu.memory_space<vmem>>, %arg3: memref<1x128xf32, #tpu.memory_space<vmem>>, %arg4: memref<8x128xf32, #tpu.memory_space<vmem>>) attributes {dimension_semantics = [#tpu.dimension_semantics<parallel>], iteration_bounds = array<i64: 1>, scalar_prefetch = 0 : i64, scratch_operands = 0 : i64, tpu.core_type = #tpu.core_type<tc>, window_params = [{transform_indices = @transform_0, window_bounds = array<i64: 8, 256>}, {pipeline_mode = #tpu.pipeline_mode<synchronous>, transform_indices = @transform_1, window_bounds = array<i64: 256, 128>}, {pipeline_mode = #tpu.pipeline_mode<synchronous>, transform_indices = @transform_2, window_bounds = array<i64: 1, 128>}, {transform_indices = @transform_3, window_bounds = array<i64: 8, 128>}]} {
    %c0 = arith.constant 0 : index
    %c0_0 = arith.constant 0 : index
    %0 = vector.load %arg1[%c0, %c0_0] : memref<8x256xf32, #tpu.memory_space<vmem>>, vector<8x256xf32>
    %c0_1 = arith.constant 0 : index
    %c0_2 = arith.constant 0 : index
    %1 = vector.load %arg2[%c0_1, %c0_2] : memref<256x128xf32, #tpu.memory_space<vmem>>, vector<256x128xf32>
    %c0_3 = arith.constant 0 : index
    %c0_4 = arith.constant 0 : index
    %2 = vector.load %arg3[%c0_3, %c0_4] : memref<1x128xf32, #tpu.memory_space<vmem>>, vector<1x128xf32>
    %cst = arith.constant dense<0.000000e+00> : vector<8x128xf32>
    %3 = tpu.matmul %0, %1, %cst {dimension_numbers = #tpu.dot_dimension_numbers<[1], [0], [0], [1], [0, 0, 1, 1], [], []>} : vector<8x256xf32>, vector<256x128xf32>, vector<8x128xf32> -> vector<8x128xf32>
    %4 = vector.broadcast %2 : vector<1x128xf32> to vector<8x128xf32>
    %5 = arith.addf %3, %4 : vector<8x128xf32>
    %6 = arith.negf %5 : vector<8x128xf32>
    %7 = math.exp %6 : vector<8x128xf32>
    %cst_5 = arith.constant 1.000000e+00 : f32
    %8 = vector.broadcast %cst_5 : f32 to vector<8x128xf32>
    %9 = arith.addf %8, %7 : vector<8x128xf32>
    %10 = arith.divf %8, %9 : vector<8x128xf32>
    %11 = arith.mulf %5, %10 : vector<8x128xf32>
    %c0_6 = arith.constant 0 : index
    %c0_7 = arith.constant 0 : index
    %12 = vector.load %arg4[%c0_6, %c0_7] : memref<8x128xf32, #tpu.memory_space<vmem>>, vector<8x128xf32>
    tpu.vector_store %arg4[%c0_6, %c0_7], %11 {strides = array<i32>} : memref<8x128xf32, #tpu.memory_space<vmem>>, vector<8x128xf32>,
    return
  }
  func.func @transform_0(%arg0: i32) -> (i32, i32) {
    %c0_i32 = arith.constant 0 : i32
    %c0_i32_0 = arith.constant 0 : i32
    return %arg0, %c0_i32 : i32, i32
  }
  func.func @transform_1(%arg0: i32) -> (i32, i32) {
    %c0_i32 = arith.constant 0 : i32
    %c0_i32_0 = arith.constant 0 : i32
    %c0_i32_1 = arith.constant 0 : i32
    return %c0_i32, %c0_i32_0 : i32, i32
  }
  func.func @transform_2(%arg0: i32) -> (i32, i32) {
    %c0_i32 = arith.constant 0 : i32
    %c0_i32_0 = arith.constant 0 : i32
    %c0_i32_1 = arith.constant 0 : i32
    return %c0_i32, %c0_i32_0 : i32, i32
  }
  func.func @transform_3(%arg0: i32) -> (i32, i32) {
    %c0_i32 = arith.constant 0 : i32
    %c0_i32_0 = arith.constant 0 : i32
    return %arg0, %c0_i32 : i32, i32
  }
}

</mosaic_0001>

<llo_original>
// kernel: _lambda_.1
$region0: #{_lambda_.1}
  #allocation0 [shape = 'u32[]', space=smem, size = 0x4, offset = 0x4, fixed_abs, tag = 'smem constant byte address 0x4 - core index']
  #allocation1 [shape = 'u32[72,128]{1,0:T(1,128)}', space=vmem, size = 0x9000, scoped, tag = 'internal scratch']
  %s0 = inlined_call_operand.vmem [shape: f32[1,256], index: 0, kind: input, shape index: {}]
  %s1 = inlined_call_operand.hbm [shape: f32[256,128], index: 1, kind: input, shape index: {}]
  %s2 = inlined_call_operand.vmem [shape: f32[1,128], index: 2, kind: input, shape index: {}]
  %s3 = inlined_call_operand.hbm [shape: f32[1,128], index: 3, kind: output, shape index: {}]
  %s4 = sld [smem:[#allocation0]]
  $region26: #{_lambda_.1} parent=0
    _
  %s6 = ssub.s32 1, %s4
  %s7 = scalar_select 0, %s6, %s4
  $region1: #{_lambda_.1} parent=0
    #allocation2 [shape = 'u8[131072]{0}', space=vmem, size = 0x20000, scoped, tag = 'input window, operand 1, single buffered']
    #allocation3 [shape = 's32[1]{0}', space=sflag, size = 0x4, scoped, tag = 'scoped memory for _lambda_.1']
    #allocation4 [shape = 's32[1]{0}', space=sflag, size = 0x4, scoped, tag = 'scoped memory for _lambda_.1']
    #allocation5 [shape = 'u8[4096]{0}', space=vmem, size = 0x1000, scoped, tag = 'output window, operand 0, single buffered']
    %8 = vsyncpa [#allocation3], 0
    %9 = vsyncpa [#allocation4], 0
    // Predicated region
    $region2: #{_lambda_.1} parent=1 // pred_check
      _
    $region3: #{_lambda_.1} parent=1 // pred_check_branch
      %11 = sbr.rel (0) target = $region5
    $region4: #{_lambda_.1} parent=1 // pred_region
      _
    $region5: #{_lambda_.1} parent=1 // pred_fallthru
      _
    // Predicated region
    $region6: #{_lambda_.1} parent=1 // pred_check
      _
    $region7: #{_lambda_.1} parent=1 // pred_check_branch
      %13 = sbr.rel (0) target = $region9
    $region8: #{_lambda_.1} parent=1 // pred_region
      %15 = vsyncadd [#allocation3], 0
      %s16 = sshll.u32 %s1, 4
      %s17 = int_to_ptr.hbm [resolvable:$true] %s16
      %s18 = sshll.u32 [#allocation2], 4
      %s19 = int_to_ptr.vmem [resolvable:$true] %s18
      %24 = dma.hbm_to_vmem [thread:$0]  %s17, 4096, %s19, [#allocation3], 128, 128, 8
    $region9: #{_lambda_.1} parent=1 // pred_fallthru
      _
    // Predicated region
    $region10: #{_lambda_.1} parent=1 // pred_check
      _
    $region11: #{_lambda_.1} parent=1 // pred_check_branch
      %26 = sbr.rel (0) target = $region13
    $region12: #{_lambda_.1} parent=1 // pred_region
      _
    $region13: #{_lambda_.1} parent=1 // pred_fallthru
      _
    // Predicated region
    $region14: #{_lambda_.1} parent=1 // pred_check
      _
    $region15: #{_lambda_.1} parent=1 // pred_check_branch
      %28 = sbr.rel (0) target = $region17
    $region16: #{_lambda_.1} parent=1 // pred_region
      %30 = dma.done [#allocation3], 4096
    $region17: #{_lambda_.1} parent=1 // pred_fallthru
      _
    %v31 = vld [vmem:[%s0] sm:$0x3]
    %v32 = vld [vmem:[%s0 + $0x2] sm:$0x3]
    %v33 = vld [vmem:[%s0 + $0x4] sm:$0x3]
    %v34 = vld [vmem:[%s0 + $0x6] sm:$0x3]
    %v35 = vld [vmem:[%s0 + $0x8] sm:$0x3]
    %v36 = vld [vmem:[%s0 + $0xa] sm:$0x3]
    %v37 = vld [vmem:[%s0 + $0xc] sm:$0x3]
    %v38 = vld [vmem:[%s0 + $0xe] sm:$0x3]
    %v39 = vld [vmem:[#allocation2] sm:$0xff]
    %v40 = vld [vmem:[#allocation2 + $0x8] sm:$0xff]
    %v41 = vld [vmem:[#allocation2 + $0x10] sm:$0xff]
    %v42 = vld [vmem:[#allocation2 + $0x18] sm:$0xff]
    %v43 = vld [vmem:[#allocation2 + $0x20] sm:$0xff]
    %v44 = vld [vmem:[#allocation2 + $0x28] sm:$0xff]
    %v45 = vld [vmem:[#allocation2 + $0x30] sm:$0xff]
    %v46 = vld [vmem:[#allocation2 + $0x38] sm:$0xff]
    %v47 = vld [vmem:[#allocation2 + $0x40] sm:$0xff]
    %v48 = vld [vmem:[#allocation2 + $0x48] sm:$0xff]
    %v49 = vld [vmem:[#allocation2 + $0x50] sm:$0xff]
    %v50 = vld [vmem:[#allocation2 + $0x58] sm:$0xff]
    %v51 = vld [vmem:[#allocation2 + $0x60] sm:$0xff]
    %v52 = vld [vmem:[#allocation2 + $0x68] sm:$0xff]
    %v53 = vld [vmem:[#allocation2 + $0x70] sm:$0xff]
    %v54 = vld [vmem:[#allocation2 + $0x78] sm:$0xff]
    %v55 = vld [vmem:[#allocation2 + $0x80] sm:$0xff]
    %v56 = vld [vmem:[#allocation2 + $0x88] sm:$0xff]
    %v57 = vld [vmem:[#allocation2 + $0x90] sm:$0xff]
    %v58 = vld [vmem:[#allocation2 + $0x98] sm:$0xff]
    %v59 = vld [vmem:[#allocation2 + $0xa0] sm:$0xff]
    %v60 = vld [vmem:[#allocation2 + $0xa8] sm:$0xff]
    %v61 = vld [vmem:[#allocation2 + $0xb0] sm:$0xff]
    %v62 = vld [vmem:[#allocation2 + $0xb8] sm:$0xff]
    %v63 = vld [vmem:[#allocation2 + $0xc0] sm:$0xff]
    %v64 = vld [vmem:[#allocation2 + $0xc8] sm:$0xff]
    %v65 = vld [vmem:[#allocation2 + $0xd0] sm:$0xff]
    %v66 = vld [vmem:[#allocation2 + $0xd8] sm:$0xff]
    %v67 = vld [vmem:[#allocation2 + $0xe0] sm:$0xff]
    %v68 = vld [vmem:[#allocation2 + $0xe8] sm:$0xff]
    %v69 = vld [vmem:[#allocation2 + $0xf0] sm:$0xff]
    %v70 = vld [vmem:[#allocation2 + $0xf8] sm:$0xff]
    %v71 = vld [vmem:[%s2] sm:$0x1]
    %v73 = vperm.slane %v71, 0
    %83 = vst [vmem:[#allocation1] ss:$9 sm:$0xff] %v31
    %s84 = scalar_lea.vmem [#allocation1], 1
    %85 = vst [vmem:[%s84] ss:$9 sm:$0xff] %v32
    %s86 = scalar_lea.vmem [#allocation1], 2
    %87 = vst [vmem:[%s86] ss:$9 sm:$0xff] %v33
    %s88 = scalar_lea.vmem [#allocation1], 3
    %89 = vst [vmem:[%s88] ss:$9 sm:$0xff] %v34
    %s90 = scalar_lea.vmem [#allocation1], 4
    %91 = vst [vmem:[%s90] ss:$9 sm:$0xff] %v35
    %s92 = scalar_lea.vmem [#allocation1], 5
    %93 = vst [vmem:[%s92] ss:$9 sm:$0xff] %v36
    %s94 = scalar_lea.vmem [#allocation1], 6
    %95 = vst [vmem:[%s94] ss:$9 sm:$0xff] %v37
    %s96 = scalar_lea.vmem [#allocation1], 7
    %97 = vst [vmem:[%s96] ss:$9 sm:$0xff] %v38
    %v98 = vld [vmem:[#allocation1] sm:$0xff]
    %v99 = vld [vmem:[#allocation1 + $0x9] sm:$0xff]
    %102 = vmatpush.msra.mxu0 %v54
    %103 = vmatpush.msra.mxu0 %v53
    %104 = vmatpush.msra.mxu0 %v52
    %105 = vmatpush.msra.mxu0 %v51
    %106 = vmatpush.msra.mxu0 %v50
    %107 = vmatpush.msra.mxu0 %v49
    %108 = vmatpush.msra.mxu0 %v48
    %109 = vmatpush.msra.mxu0 %v47
    %110 = vmatpush.msra.mxu0 %v46
    %111 = vmatpush.msra.mxu0 %v45
    %112 = vmatpush.msra.mxu0 %v44
    %113 = vmatpush.msra.mxu0 %v43
    %114 = vmatpush.msra.mxu0 %v42
    %115 = vmatpush.msra.mxu0 %v41
    %116 = vmatpush.msra.mxu0 %v40
    %117 = vmatpush.msra.mxu0 %v39
    %118 = vmatmul.f32.gmra.mxu0 %v98
    %v119 = vpop.f32.mrf.mxu0
    %v120 = vadd.f32 %v73, %v119
    %121 = vdwg.mxu0
    %122 = vmatpush.msra.mxu0 %v70
    %123 = vmatpush.msra.mxu0 %v69
    %124 = vmatpush.msra.mxu0 %v68
    %125 = vmatpush.msra.mxu0 %v67
    %126 = vmatpush.msra.mxu0 %v66
    %127 = vmatpush.msra.mxu0 %v65
    %128 = vmatpush.msra.mxu0 %v64
    %129 = vmatpush.msra.mxu0 %v63
    %130 = vmatpush.msra.mxu0 %v62
    %131 = vmatpush.msra.mxu0 %v61
    %132 = vmatpush.msra.mxu0 %v60
    %133 = vmatpush.msra.mxu0 %v59
    %134 = vmatpush.msra.mxu0 %v58
    %135 = vmatpush.msra.mxu0 %v57
    %136 = vmatpush.msra.mxu0 %v56
    %137 = vmatpush.msra.mxu0 %v55
    %138 = vmatmul.f32.gmra.mxu0 %v99
    %v139 = vpop.f32.mrf.mxu0
    %v140 = vadd.f32 %v120, %v139
    %141 = vdwg.mxu0
    %v142 = vxor.u32 %v140, 2147483648
    %v143 = vmul.f32 %v142, 1.442695
    %v144 = vpow.pop %v143
    %v145 = vadd.f32 %v144, 1.0
    %v146 = vrcp.pop %v145
    %v147 = vmul.f32 %v145, %v146
    %v148 = vsub.f32 1.0, %v147
    %v149 = vmul.f32 %v146, %v148
    %v150 = vadd.f32 %v146, %v149
    %vm151 = vweird.f32 %v145
    %vm152 = vweird.f32 %v146
    %vm153 = vmor %vm151, %vm152
    %v154 = vsel %vm153, %v146, %v150
    %v155 = vand.u32 2147483647, %v145
    %vm156 = vcmp.eq.f32.partialorder %v155, 8.507059e+37
    %v157 = vand.u32 %v145, 2147483648
    %v158 = vor.u32 1.1754944e-38, %v157
    %v159 = vsel %vm156, %v158, %v154
    %v160 = vmul.f32 1.0, %v159
    %v161 = vmul.f32 %v140, %v160
    %162 = vst [vmem:[#allocation5] sm:$0xff] %v161
    // Predicated region
    $region18: #{_lambda_.1} parent=1 // pred_check
      _
    $region19: #{_lambda_.1} parent=1 // pred_check_branch
      %164 = sbr.rel (0) target = $region21
    $region20: #{_lambda_.1} parent=1 // pred_region
      %166 = vsyncadd [#allocation4], 112
      %s167 = sshll.u32 [#allocation5], 4
      %s168 = int_to_ptr.vmem [resolvable:$true] %s167
      %s169 = sshll.u32 %s3, 4
      %s170 = int_to_ptr.hbm [resolvable:$true] %s169
      %175 = dma.vmem_to_hbm [thread:$0]  %s168, 16, %s170, [#allocation4], 16, 16, 1
    $region21: #{_lambda_.1} parent=1 // pred_fallthru
      _
    // Predicated region
    $region22: #{_lambda_.1} parent=1 // pred_check
      _
    $region23: #{_lambda_.1} parent=1 // pred_check_branch
      %177 = sbr.rel (0) target = $region25
    $region24: #{_lambda_.1} parent=1 // pred_region
      %179 = dma.done [#allocation4], 128
    $region25: #{_lambda_.1} parent=1 // pred_fallthru
      _
    %180 = vsyncpa [#allocation3], 1
    %181 = vsyncpa [#allocation4], 1

</llo_original>
